<compile_context>
chip_gen: v7x
topology: tpu7x:2x2x1
jax: 0.10.0
libtpu: 0.0.40
codegen_flags: <defaults>
</compile_context>

<pallas_src>
import functools

import jax
import jax.numpy as jnp
from jax.experimental import pallas as pl
from jax.experimental.pallas import tpu as pltpu

# Scaled-down dims (real EfficientNet-B3: stem=40, fc_channels=1536).
C_IN = 3
C_STEM = 32
FC_CHANNELS = 256     # stand-in for self.fc_channels (=1536 in the real model)
LEAKY_SLOPE = 0.01    # nn.LeakyReLU() default
BN_EPS = 1e-5
SUBLANE = 8


def _round_up(a, m):
    return (a + m - 1) // m * m


def _silu(x):
    # SiLU(x) = x*sigmoid(x) = 0.5*x*(1 + tanh(0.5*x)): ONE EUP op per element
    # (vs exp + reciprocal), the EUP slot is the binding unit for this kernel.
    return 0.5 * x * (1.0 + jnp.tanh(0.5 * x))


# ----------------------------------------------------------------------------
# Pallas kernels
# ----------------------------------------------------------------------------
def _features_pool_kernel(p_ref, ws_ref, bs_ref, wh_ref, bh_ref, o_ref, acc_ref,
                          *, ew_dtype):
    """Fused: stem conv (+BN+SiLU) -> 1x1 conv (+BN+SiLU) -> global avg pool.

    Grid = (batch, outer spatial, inner spatial).  The inner spatial axis is
    an 'arbitrary' accumulation axis; per-(batch, outer) pooled partial sums
    accumulate in an [8, Cout] VMEM scratch (pure VALU adds, no per-step
    cross-sublane reduce) and are written lane-dense at the last inner step.
    """
    i = pl.program_id(2)

    @pl.when(i == 0)
    def _init():
        acc_ref[...] = jnp.zeros_like(acc_ref)

    # Stem 3x3/s2 conv as matmul on im2col patches (bf16 MXU, f32 accumulate),
    # bias + SiLU in ew_dtype (bf16 on v6e/v7x doubles VPU/EUP throughput).
    h = jnp.dot(p_ref[0], ws_ref[...],
                preferred_element_type=jnp.float32).astype(ew_dtype)
    h = _silu(h + bs_ref[...])

    # 1x1 projection conv; the [tm, C_STEM] intermediate never leaves VMEM.
    y = jnp.dot(h.astype(jnp.bfloat16), wh_ref[...],
                preferred_element_type=jnp.float32).astype(ew_dtype)
    y = _silu(y + bh_ref[...])

    # Pool partial sums: sublane-aligned [8, Cout] f32 accumulation; the 8->1
    # sublane reduce happens once per (batch, outer) block at finalize.
    y32 = y.astype(jnp.float32)
    acc_ref[...] += jnp.sum(y32.reshape(-1, SUBLANE, y32.shape[-1]), axis=0)

    @pl.when(i == pl.num_programs(2) - 1)
    def _finalize():
        o_ref[0] = jnp.sum(acc_ref[...], axis=0, keepdims=True)


def _head_kernel(parts_ref, corr_ref, w0_ref, b0_ref, w1_ref, b1_ref, o_ref,
                 *, inv_hw, n_outer, c):
    """Combine pool partials -> fc0 -> LeakyReLU -> fc1, fused."""
    parts = parts_ref[...][:, 0, :]                      # [B, n_outer*C] f32
    pooled = parts[:, 0:c]
    for k in range(1, n_outer):                           # static, lane-aligned slices
        pooled = pooled + parts[:, k * c:(k + 1) * c]
    # Subtract the constant contribution of zero-padded spatial rows, then
    # divide by HW (avgpool) — both folded here instead of the features kernel.
    pooled = (pooled - corr_ref[...]) * inv_hw            # [B, C] f32

    x = pooled.astype(jnp.bfloat16)
    h = jnp.dot(x, w0_ref[...], preferred_element_type=jnp.float32)
    h = h + b0_ref[...]
    h = jnp.where(h >= 0.0, h, LEAKY_SLOPE * h)           # LeakyReLU(0.01)
    # fc1 (out_features=1) as a VPU mul + lane reduction: avoids an N=1 MXU matmul.
    o_ref[...] = jnp.sum(h * w1_ref[...], axis=-1, keepdims=True) + b1_ref[0, 0]


# ----------------------------------------------------------------------------
# Pallas wrappers
# ----------------------------------------------------------------------------
def features_avgpool(patches, w_s, b_s, w_h, b_h, *, tm, n_outer, n_inner,
                     ew_dtype):
    """patches: [B, HW_pad, Kd] bf16 -> per-outer pool partial sums.

    Returns [B, 1, n_outer*Cout] f32 (un-normalized sums; the head kernel
    combines the outer partials, removes padded-row contributions and divides
    by HW).
    """
    B, _, Kd = patches.shape
    Cout = w_h.shape[1]
    kernel = functools.partial(_features_pool_kernel, ew_dtype=ew_dtype)
    return pl.pallas_call(
        kernel,
        out_shape=jax.ShapeDtypeStruct((B, 1, n_outer * Cout), jnp.float32),
        grid=(B, n_outer, n_inner),
        in_specs=[
            pl.BlockSpec((1, tm, Kd), lambda b, o, i: (b, o * n_inner + i, 0)),
            pl.BlockSpec((Kd, C_STEM), lambda b, o, i: (0, 0)),
            pl.BlockSpec((1, C_STEM), lambda b, o, i: (0, 0)),
            pl.BlockSpec((C_STEM, Cout), lambda b, o, i: (0, 0)),
            pl.BlockSpec((1, Cout), lambda b, o, i: (0, 0)),
        ],
        out_specs=pl.BlockSpec((1, 1, Cout), lambda b, o, i: (b, 0, o)),
        scratch_shapes=[pltpu.VMEM((SUBLANE, Cout), jnp.float32)],
        compiler_params=pltpu.CompilerParams(
            dimension_semantics=("parallel", "parallel", "arbitrary"),
            vmem_limit_bytes=32 * 1024 * 1024),
    )(patches, w_s, b_s, w_h, b_h)


def head_mlp(parts, pad_corr, w0, b0, w1_row, b1, *, inv_hw, n_outer):
    """parts: [B, 1, n_outer*C] pool partial sums -> [B, 1] logits."""
    B, _, NC = parts.shape
    C = w0.shape[0]
    kernel = functools.partial(_head_kernel, inv_hw=inv_hw, n_outer=n_outer, c=C)
    return pl.pallas_call(
        kernel,
        out_shape=jax.ShapeDtypeStruct((B, 1), jnp.float32),
        grid=(1,),
        in_specs=[
            pl.BlockSpec((B, 1, NC), lambda i: (0, 0, 0)),
            pl.BlockSpec((1, C), lambda i: (0, 0)),
            pl.BlockSpec((C, C), lambda i: (0, 0)),
            pl.BlockSpec((1, C), lambda i: (0, 0)),
            pl.BlockSpec((1, C), lambda i: (0, 0)),
            pl.BlockSpec(memory_space=pltpu.MemorySpace.SMEM),   # fc1 bias scalar
        ],
        out_specs=pl.BlockSpec((B, 1), lambda i: (0, 0)),
        compiler_params=pltpu.CompilerParams(
            dimension_semantics=("arbitrary",),
            vmem_limit_bytes=32 * 1024 * 1024),
    )(parts, pad_corr, w0, b0, w1_row, b1)


# ----------------------------------------------------------------------------
# Plain-JAX glue: patch extraction, BN folding, parameter setup
# ----------------------------------------------------------------------------
def extract_patches_nhwc(x, k, stride, pad):
    """im2col: x [B, H, W, C] -> [B, Ho, Wo, k*k*C] (patch order: ki, kj, C)."""
    # TODO(synk): still HBM-materialized by XLA; an in-kernel 9-tap halo DMA
    # over raw NHWC would remove this extra pass over the input entirely.
    x = jnp.pad(x, ((0, 0), (pad, pad), (pad, pad), (0, 0)))
    B, H, W, C = x.shape
    Ho = (H - k) // stride + 1
    Wo = (W - k) // stride + 1
    slabs = []
    for i in range(k):
        for j in range(k):
            slabs.append(x[:, i:i + Ho * stride:stride,
                           j:j + Wo * stride:stride, :])
    return jnp.concatenate(slabs, axis=-1)


def fold_bn(w, bn):
    """Fold BatchNorm (gamma, beta, mean, var) into conv weight/bias."""
    gamma, beta, mean, var = bn
    scale = gamma / jnp.sqrt(var + BN_EPS)           # [Cout]
    w_f = w * scale[None, :]                         # [Kd, Cout]
    b_f = (beta - mean * scale)[None, :]             # [1, Cout]
    return w_f, b_f


def _choose_tile(hw, tm_req):
    """Pick the spatial tile size.

    Prefer a multiple-of-8 divisor of hw (no padded rows -> no correction and
    no per-step mask); otherwise fall back to the requested size with
    zero-padding, whose constant pool contribution is removed in the head.
    """
    tm_req = _round_up(max(SUBLANE, min(tm_req, hw)), SUBLANE)
    best = 0
    d = SUBLANE
    while d <= tm_req:
        if hw % d == 0:
            best = d
        d += SUBLANE
    if best >= max(SUBLANE, tm_req // 2):
        return best, hw                       # exact tiling, no padding
    return tm_req, _round_up(hw, tm_req)      # padded tiling


def init_params(key):
    ks = jax.random.split(key, 12)
    n = lambda k, shp, s=0.05: s * jax.random.normal(k, shp, dtype=jnp.float32)
    bn = lambda k, c: (
        1.0 + 0.1 * jax.random.normal(k, (c,), dtype=jnp.float32),                        # gamma
        0.1 * jax.random.normal(jax.random.fold_in(k, 1), (c,), jnp.float32),             # beta
        0.05 * jax.random.normal(jax.random.fold_in(k, 2), (c,), jnp.float32),            # mean
        1.0 + 0.1 * jnp.abs(jax.random.normal(jax.random.fold_in(k, 3), (c,), jnp.float32)),  # var
    )
    return {
        "stem_w": n(ks[0], (3 * 3 * C_IN, C_STEM)),          # 3x3 conv, im2col layout
        "stem_bn": bn(ks[1], C_STEM),
        "head_w": n(ks[2], (C_STEM, FC_CHANNELS)),           # 1x1 projection conv
        "head_bn": bn(ks[3], FC_CHANNELS),
        "fc0_w": n(ks[4], (FC_CHANNELS, FC_CHANNELS)),       # Linear stored [in, out]
        "fc0_b": n(ks[5], (1, FC_CHANNELS)),
        "fc1_w": n(ks[6], (FC_CHANNELS, 1)),
        "fc1_b": n(ks[7], (1, 1)),
    }


def rot_model_forward(x_nchw, params, *, tm=1568, ew_dtype=jnp.bfloat16):
    """x_nchw: [B, 3, H, W] float32 -> [B] float32.

    tm: spatial-tile rows per grid step.  Default 1568 divides the 112x112
        stem output (HW=12544) of a 224x224 image -> 8 spatial tiles/image
        (2 outer x 4 inner), amortizing the ~0.35 us per-grid-step overhead
        while keeping the VMEM footprint at ~3 MiB (safe on v7x's 64 MiB).
    ew_dtype: elementwise dtype for bias+SiLU (bf16 on v6e/v7x for 2x VPU/EUP
        throughput; pass jnp.float32 on v5e which has no bf16 VALU/EUP).
    """
    # NHWC, bf16 immediately so the im2col materialization moves half the bytes.
    x = jnp.transpose(x_nchw, (0, 2, 3, 1)).astype(jnp.bfloat16)
    B = x.shape[0]

    # --- im2col for the stem 3x3/s2 conv (plain-JAX glue, bf16) ---
    patches = extract_patches_nhwc(x, k=3, stride=2, pad=1)        # [B, Ho, Wo, 27]
    _, Ho, Wo, Kd = patches.shape
    HW = Ho * Wo
    patches = patches.reshape(B, HW, Kd)

    Kd_pad = _round_up(Kd, SUBLANE)
    tm, HW_pad = _choose_tile(HW, tm)
    n_sp = HW_pad // tm
    n_outer = 2 if (n_sp % 2 == 0) else 1     # v7x: shard reduction over 2 TCs
    n_inner = n_sp // n_outer
    patches = jnp.pad(patches, ((0, 0), (0, HW_pad - HW), (0, Kd_pad - Kd)))

    # Fold BN into conv weight/bias; MXU operands bf16, pool accumulate f32.
    w_s, b_s = fold_bn(params["stem_w"], params["stem_bn"])
    w_h, b_h = fold_bn(params["head_w"], params["head_bn"])

    # Constant pool contribution of zero-padded spatial rows (subtracted once
    # in the head kernel) — replaces the old per-step iota/where row mask.
    n_pad = HW_pad - HW
    if n_pad:
        h_pad = _silu(b_s)                              # stem output of a zero patch
        y_pad = _silu(h_pad @ w_h + b_h)                # [1, Cout]
        pad_corr = (float(n_pad) * y_pad).astype(jnp.float32)
    else:
        pad_corr = jnp.zeros((1, FC_CHANNELS), jnp.float32)

    w_s_b = jnp.pad(w_s, ((0, Kd_pad - Kd), (0, 0))).astype(jnp.bfloat16)
    w_h_b = w_h.astype(jnp.bfloat16)
    b_s_e = b_s.astype(ew_dtype)
    b_h_e = b_h.astype(ew_dtype)

    # --- fused stem conv + 1x1 projection + global avg-pool partials ---
    parts = features_avgpool(patches, w_s_b, b_s_e, w_h_b, b_h_e,
                             tm=tm, n_outer=n_outer, n_inner=n_inner,
                             ew_dtype=ew_dtype)          # [B, 1, n_outer*FC]

    # --- combine partials / divide by HW + fc0 -> LeakyReLU -> fc1 (fused) ---
    out = head_mlp(parts, pad_corr,
                   params["fc0_w"].astype(jnp.bfloat16), params["fc0_b"],
                   params["fc1_w"].reshape(1, FC_CHANNELS), params["fc1_b"],
                   inv_hw=1.0 / HW, n_outer=n_outer)
    return out[:, 0]                                      # squeeze(dim=1)


if __name__ == "__main__":
    key = jax.random.PRNGKey(0)
    kx, kx2, kp = jax.random.split(key, 3)
    params = init_params(kp)

    # 32x32 input -> stem HW=256.  Two exact tilings: tm=64 (4 tiles, 2-way
    # outer split -> v7x dual-TC path) and tm=256 (single tile).  No padded
    # rows in either, so the results must agree (f32 add-order noise only).
    x = jax.random.normal(kx, (2, 3, 32, 32), dtype=jnp.float32)   # NCHW input
    out_a = jax.jit(functools.partial(rot_model_forward, params=params, tm=64))(x)
    out_b = jax.jit(functools.partial(rot_model_forward, params=params, tm=256))(x)
    jax.block_until_ready((out_a, out_b))

    # 30x30 input -> stem HW=225 (no multiple-of-8 divisor): exercises the
    # padded-tile path with the constant pool correction in the head kernel.
    x2 = jax.random.normal(kx2, (1, 3, 30, 30), dtype=jnp.float32)
    out_c = jax.jit(functools.partial(rot_model_forward, params=params))(x2)
    jax.block_until_ready(out_c)

    assert out_a.shape == (2,) and out_a.dtype == jnp.float32
    assert out_b.shape == (2,) and out_c.shape == (1,)
    assert bool(jnp.all(jnp.isfinite(out_a)))
    assert bool(jnp.all(jnp.isfinite(out_b)))
    assert bool(jnp.all(jnp.isfinite(out_c)))
    assert bool(jnp.max(jnp.abs(out_a - out_b)) < 1e-2), (out_a, out_b)
    print("KERNEL_OK")
</pallas_src>

<mosaic_0001>
module attributes {stable_mosaic.version = 11 : i64} {
  func.func @_features_pool_kernel(%arg0: i32, %arg1: i32, %arg2: i32, %arg3: memref<1x64x32xbf16, #tpu.memory_space<vmem>>, %arg4: memref<32x32xbf16, #tpu.memory_space<vmem>>, %arg5: memref<1x32xbf16, #tpu.memory_space<vmem>>, %arg6: memref<32x256xbf16, #tpu.memory_space<vmem>>, %arg7: memref<1x256xbf16, #tpu.memory_space<vmem>>, %arg8: memref<1x1x256xf32, #tpu.memory_space<vmem>>, %arg9: memref<8x256xf32, #tpu.memory_space<vmem>>) attributes {dimension_semantics = [#tpu.dimension_semantics<parallel>, #tpu.dimension_semantics<parallel>, #tpu.dimension_semantics<arbitrary>], iteration_bounds = array<i64: 2, 2, 2>, scalar_prefetch = 0 : i64, scratch_operands = 1 : i64, tpu.core_type = #tpu.core_type<tc>, window_params = [{transform_indices = @transform_0, window_bounds = array<i64: 1, 64, 32>}, {pipeline_mode = #tpu.pipeline_mode<synchronous>, transform_indices = @transform_1, window_bounds = array<i64: 32, 32>}, {pipeline_mode = #tpu.pipeline_mode<synchronous>, transform_indices = @transform_2, window_bounds = array<i64: 1, 32>}, {pipeline_mode = #tpu.pipeline_mode<synchronous>, transform_indices = @transform_3, window_bounds = array<i64: 32, 256>}, {pipeline_mode = #tpu.pipeline_mode<synchronous>, transform_indices = @transform_4, window_bounds = array<i64: 1, 256>}, {transform_indices = @transform_5, window_bounds = array<i64: 1, 1, 256>}]} {
    %c0_i32 = arith.constant 0 : i32
    %0 = arith.cmpi eq, %arg2, %c0_i32 : i32
    %1 = arith.extui %0 : i1 to i32
    %c0_i32_0 = arith.constant 0 : i32
    %2 = arith.cmpi ne, %1, %c0_i32_0 : i32
    scf.if %2 {
      %cst_24 = arith.constant 0.000000e+00 : f32
      %42 = vector.broadcast %cst_24 : f32 to vector<8x256xf32>
      %c0_25 = arith.constant 0 : index
      %c0_26 = arith.constant 0 : index
      %43 = vector.load %arg9[%c0_25, %c0_26] : memref<8x256xf32, #tpu.memory_space<vmem>>, vector<8x256xf32>
      tpu.vector_store %arg9[%c0_25, %c0_26], %42 {strides = array<i32>} : memref<8x256xf32, #tpu.memory_space<vmem>>, vector<8x256xf32>,
    } else {
    }
    %c0 = arith.constant 0 : index
    %c0_1 = arith.constant 0 : index
    %c0_2 = arith.constant 0 : index
    %3 = vector.load %arg3[%c0, %c0_1, %c0_2] : memref<1x64x32xbf16, #tpu.memory_space<vmem>>, vector<1x64x32xbf16>
    %4 = vector.shape_cast %3 : vector<1x64x32xbf16> to vector<64x32xbf16>
    %c0_3 = arith.constant 0 : index
    %c0_4 = arith.constant 0 : index
    %5 = vector.load %arg4[%c0_3, %c0_4] : memref<32x32xbf16, #tpu.memory_space<vmem>>, vector<32x32xbf16>
    %cst = arith.constant dense<0.000000e+00> : vector<64x32xf32>
    %6 = tpu.matmul %4, %5, %cst {dimension_numbers = #tpu.dot_dimension_numbers<[1], [0], [0], [1], [0, 0, 1, 1], [], []>} : vector<64x32xbf16>, vector<32x32xbf16>, vector<64x32xf32> -> vector<64x32xf32>
    %7 = arith.truncf %6 : vector<64x32xf32> to vector<64x32xbf16>
    %c0_5 = arith.constant 0 : index
    %c0_6 = arith.constant 0 : index
    %8 = vector.load %arg5[%c0_5, %c0_6] : memref<1x32xbf16, #tpu.memory_space<vmem>>, vector<1x32xbf16>
    %9 = vector.broadcast %8 : vector<1x32xbf16> to vector<64x32xbf16>
    %10 = arith.addf %7, %9 : vector<64x32xbf16>
    %cst_7 = arith.constant 5.000000e-01 : bf16
    %11 = vector.broadcast %cst_7 : bf16 to vector<64x32xbf16>
    %12 = arith.mulf %11, %10 : vector<64x32xbf16>
    %cst_8 = arith.constant 5.000000e-01 : bf16
    %13 = vector.broadcast %cst_8 : bf16 to vector<64x32xbf16>
    %14 = arith.mulf %13, %10 : vector<64x32xbf16>
    %15 = math.tanh %14 : vector<64x32xbf16>
    %cst_9 = arith.constant 1.000000e+00 : bf16
    %16 = vector.broadcast %cst_9 : bf16 to vector<64x32xbf16>
    %17 = arith.addf %16, %15 : vector<64x32xbf16>
    %18 = arith.mulf %12, %17 : vector<64x32xbf16>
    %c0_10 = arith.constant 0 : index
    %c0_11 = arith.constant 0 : index
    %19 = vector.load %arg6[%c0_10, %c0_11] : memref<32x256xbf16, #tpu.memory_space<vmem>>, vector<32x256xbf16>
    %cst_12 = arith.constant dense<0.000000e+00> : vector<64x256xf32>
    %20 = tpu.matmul %18, %19, %cst_12 {dimension_numbers = #tpu.dot_dimension_numbers<[1], [0], [0], [1], [0, 0, 1, 1], [], []>} : vector<64x32xbf16>, vector<32x256xbf16>, vector<64x256xf32> -> vector<64x256xf32>
    %21 = arith.truncf %20 : vector<64x256xf32> to vector<64x256xbf16>
    %c0_13 = arith.constant 0 : index
    %c0_14 = arith.constant 0 : index
    %22 = vector.load %arg7[%c0_13, %c0_14] : memref<1x256xbf16, #tpu.memory_space<vmem>>, vector<1x256xbf16>
    %23 = vector.broadcast %22 : vector<1x256xbf16> to vector<64x256xbf16>
    %24 = arith.addf %21, %23 : vector<64x256xbf16>
    %cst_15 = arith.constant 5.000000e-01 : bf16
    %25 = vector.broadcast %cst_15 : bf16 to vector<64x256xbf16>
    %26 = arith.mulf %25, %24 : vector<64x256xbf16>
    %cst_16 = arith.constant 5.000000e-01 : bf16
    %27 = vector.broadcast %cst_16 : bf16 to vector<64x256xbf16>
    %28 = arith.mulf %27, %24 : vector<64x256xbf16>
    %29 = math.tanh %28 : vector<64x256xbf16>
    %cst_17 = arith.constant 1.000000e+00 : bf16
    %30 = vector.broadcast %cst_17 : bf16 to vector<64x256xbf16>
    %31 = arith.addf %30, %29 : vector<64x256xbf16>
    %32 = arith.mulf %26, %31 : vector<64x256xbf16>
    %33 = arith.extf %32 : vector<64x256xbf16> to vector<64x256xf32>
    %c0_18 = arith.constant 0 : index
    %c0_19 = arith.constant 0 : index
    %34 = vector.load %arg9[%c0_18, %c0_19] : memref<8x256xf32, #tpu.memory_space<vmem>>, vector<8x256xf32>
    %35 = vector.shape_cast %33 : vector<64x256xf32> to vector<8x8x256xf32>
    %cst_20 = arith.constant dense<0.000000e+00> : vector<8x256xf32>
    %36 = vector.multi_reduction <add>, %35, %cst_20 [0] : vector<8x8x256xf32> to vector<8x256xf32>
    %37 = arith.addf %34, %36 : vector<8x256xf32>
    %c0_21 = arith.constant 0 : index
    %c0_22 = arith.constant 0 : index
    %38 = vector.load %arg9[%c0_21, %c0_22] : memref<8x256xf32, #tpu.memory_space<vmem>>, vector<8x256xf32>
    tpu.vector_store %arg9[%c0_21, %c0_22], %37 {strides = array<i32>} : memref<8x256xf32, #tpu.memory_space<vmem>>, vector<8x256xf32>,
    %c1_i32 = arith.constant 1 : i32
    %39 = arith.cmpi eq, %arg2, %c1_i32 : i32
    %40 = arith.extui %39 : i1 to i32
    %c0_i32_23 = arith.constant 0 : i32
    %41 = arith.cmpi ne, %40, %c0_i32_23 : i32
    scf.if %41 {
      %c0_24 = arith.constant 0 : index
      %c0_25 = arith.constant 0 : index
      %42 = vector.load %arg9[%c0_24, %c0_25] : memref<8x256xf32, #tpu.memory_space<vmem>>, vector<8x256xf32>
      %cst_26 = arith.constant dense<0.000000e+00> : vector<256xf32>
      %43 = vector.multi_reduction <add>, %42, %cst_26 [0] : vector<8x256xf32> to vector<256xf32>
      %44 = vector.shape_cast %43 : vector<256xf32> to vector<1x256xf32>
      %c0_27 = arith.constant 0 : index
      %c0_28 = arith.constant 0 : index
      %c0_29 = arith.constant 0 : index
      %45 = vector.load %arg8[%c0_27, %c0_28, %c0_29] : memref<1x1x256xf32, #tpu.memory_space<vmem>>, vector<1x1x256xf32>
      %46 = vector.shape_cast %45 : vector<1x1x256xf32> to vector<1x256xf32>
      %47 = vector.shape_cast %44 : vector<1x256xf32> to vector<1x1x256xf32>
      tpu.vector_store %arg8[%c0_27, %c0_28, %c0_29], %47 {strides = array<i32>} : memref<1x1x256xf32, #tpu.memory_space<vmem>>, vector<1x1x256xf32>,
    } else {
    }
    return
  }
  func.func @transform_0(%arg0: i32, %arg1: i32, %arg2: i32) -> (i32, i32, i32) {
    %c2_i32 = arith.constant 2 : i32
    %0 = arith.muli %arg1, %c2_i32 : i32
    %1 = arith.addi %0, %arg2 : i32
    %c0_i32 = arith.constant 0 : i32
    %c0_i32_0 = arith.constant 0 : i32
    return %arg0, %1, %c0_i32 : i32, i32, i32
  }
  func.func @transform_1(%arg0: i32, %arg1: i32, %arg2: i32) -> (i32, i32) {
    %c0_i32 = arith.constant 0 : i32
    %c0_i32_0 = arith.constant 0 : i32
    %c0_i32_1 = arith.constant 0 : i32
    return %c0_i32, %c0_i32_0 : i32, i32
  }
  func.func @transform_2(%arg0: i32, %arg1: i32, %arg2: i32) -> (i32, i32) {
    %c0_i32 = arith.constant 0 : i32
    %c0_i32_0 = arith.constant 0 : i32
    %c0_i32_1 = arith.constant 0 : i32
    return %c0_i32, %c0_i32_0 : i32, i32
  }
  func.func @transform_3(%arg0: i32, %arg1: i32, %arg2: i32) -> (i32, i32) {
    %c0_i32 = arith.constant 0 : i32
    %c0_i32_0 = arith.constant 0 : i32
    %c0_i32_1 = arith.constant 0 : i32
    return %c0_i32, %c0_i32_0 : i32, i32
  }
  func.func @transform_4(%arg0: i32, %arg1: i32, %arg2: i32) -> (i32, i32) {
    %c0_i32 = arith.constant 0 : i32
    %c0_i32_0 = arith.constant 0 : i32
    %c0_i32_1 = arith.constant 0 : i32
    return %c0_i32, %c0_i32_0 : i32, i32
  }
  func.func @transform_5(%arg0: i32, %arg1: i32, %arg2: i32) -> (i32, i32, i32) {
    %c0_i32 = arith.constant 0 : i32
    %c0_i32_0 = arith.constant 0 : i32
    return %arg0, %c0_i32, %arg1 : i32, i32, i32
  }
}

module attributes {stable_mosaic.version = 11 : i64} {
  func.func @_head_kernel(%arg0: i32, %arg1: memref<2x1x512xf32, #tpu.memory_space<vmem>>, %arg2: memref<1x256xf32, #tpu.memory_space<vmem>>, %arg3: memref<256x256xbf16, #tpu.memory_space<vmem>>, %arg4: memref<1x256xf32, #tpu.memory_space<vmem>>, %arg5: memref<1x256xf32, #tpu.memory_space<vmem>>, %arg6: memref<1x1xf32, #tpu.memory_space<smem>>, %arg7: memref<2x1xf32, #tpu.memory_space<vmem>>) attributes {dimension_semantics = [#tpu.dimension_semantics<arbitrary>], iteration_bounds = array<i64: 1>, scalar_prefetch = 0 : i64, scratch_operands = 0 : i64, tpu.core_type = #tpu.core_type<tc>, window_params = [{pipeline_mode = #tpu.pipeline_mode<synchronous>, transform_indices = @transform_0, window_bounds = array<i64: 2, 1, 512>}, {pipeline_mode = #tpu.pipeline_mode<synchronous>, transform_indices = @transform_1, window_bounds = array<i64: 1, 256>}, {pipeline_mode = #tpu.pipeline_mode<synchronous>, transform_indices = @transform_2, window_bounds = array<i64: 256, 256>}, {pipeline_mode = #tpu.pipeline_mode<synchronous>, transform_indices = @transform_3, window_bounds = array<i64: 1, 256>}, {pipeline_mode = #tpu.pipeline_mode<synchronous>, transform_indices = @transform_4, window_bounds = array<i64: 1, 256>}, {transform_indices = @transform_5, window_bounds = array<i64: 1, 1>}, {pipeline_mode = #tpu.pipeline_mode<synchronous>, transform_indices = @transform_6, window_bounds = array<i64: 2, 1>}]} {
    %c0 = arith.constant 0 : index
    %c0_0 = arith.constant 0 : index
    %c0_1 = arith.constant 0 : index
    %0 = vector.load %arg1[%c0, %c0_0, %c0_1] : memref<2x1x512xf32, #tpu.memory_space<vmem>>, vector<2x1x512xf32>
    %1 = vector.shape_cast %0 : vector<2x1x512xf32> to vector<2x512xf32>
    %2 = vector.extract_strided_slice %1 {offsets = [0, 0], sizes = [2, 256], strides = [1, 1]} : vector<2x512xf32> to vector<2x256xf32>
    %3 = vector.extract_strided_slice %1 {offsets = [0, 256], sizes = [2, 256], strides = [1, 1]} : vector<2x512xf32> to vector<2x256xf32>
    %4 = arith.addf %2, %3 : vector<2x256xf32>
    %c0_2 = arith.constant 0 : index
    %c0_3 = arith.constant 0 : index
    %5 = vector.load %arg2[%c0_2, %c0_3] : memref<1x256xf32, #tpu.memory_space<vmem>>, vector<1x256xf32>
    %6 = vector.broadcast %5 : vector<1x256xf32> to vector<2x256xf32>
    %7 = arith.subf %4, %6 : vector<2x256xf32>
    %cst = arith.constant 3.906250e-03 : f32
    %8 = vector.broadcast %cst : f32 to vector<2x256xf32>
    %9 = arith.mulf %7, %8 : vector<2x256xf32>
    %10 = arith.truncf %9 : vector<2x256xf32> to vector<2x256xbf16>
    %c0_4 = arith.constant 0 : index
    %c0_5 = arith.constant 0 : index
    %11 = vector.load %arg3[%c0_4, %c0_5] : memref<256x256xbf16, #tpu.memory_space<vmem>>, vector<256x256xbf16>
    %cst_6 = arith.constant dense<0.000000e+00> : vector<2x256xf32>
    %12 = tpu.matmul %10, %11, %cst_6 {dimension_numbers = #tpu.dot_dimension_numbers<[1], [0], [0], [1], [0, 0, 1, 1], [], []>} : vector<2x256xbf16>, vector<256x256xbf16>, vector<2x256xf32> -> vector<2x256xf32>
    %c0_7 = arith.constant 0 : index
    %c0_8 = arith.constant 0 : index
    %13 = vector.load %arg4[%c0_7, %c0_8] : memref<1x256xf32, #tpu.memory_space<vmem>>, vector<1x256xf32>
    %14 = vector.broadcast %13 : vector<1x256xf32> to vector<2x256xf32>
    %15 = arith.addf %12, %14 : vector<2x256xf32>
    %cst_9 = arith.constant 0.000000e+00 : f32
    %16 = vector.broadcast %cst_9 : f32 to vector<2x256xf32>
    %17 = arith.cmpf oge, %15, %16 : vector<2x256xf32>
    %cst_10 = arith.constant 0.00999999977 : f32
    %18 = vector.broadcast %cst_10 : f32 to vector<2x256xf32>
    %19 = arith.mulf %18, %15 : vector<2x256xf32>
    %20 = arith.select %17, %15, %19 : vector<2x256xi1>, vector<2x256xf32>
    %c0_11 = arith.constant 0 : index
    %c0_12 = arith.constant 0 : index
    %21 = vector.load %arg5[%c0_11, %c0_12] : memref<1x256xf32, #tpu.memory_space<vmem>>, vector<1x256xf32>
    %22 = vector.broadcast %21 : vector<1x256xf32> to vector<2x256xf32>
    %23 = arith.mulf %20, %22 : vector<2x256xf32>
    %cst_13 = arith.constant dense<0.000000e+00> : vector<2xf32>
    %24 = vector.multi_reduction <add>, %23, %cst_13 [1] : vector<2x256xf32> to vector<2xf32>
    %25 = vector.shape_cast %24 : vector<2xf32> to vector<2x1xf32>
    %c0_14 = arith.constant 0 : index
    %c0_15 = arith.constant 0 : index
    %26 = memref.load %arg6[%c0_14, %c0_15] : memref<1x1xf32, #tpu.memory_space<smem>>
    %27 = vector.broadcast %26 : f32 to vector<2x1xf32>
    %28 = arith.addf %25, %27 : vector<2x1xf32>
    %c0_16 = arith.constant 0 : index
    %c0_17 = arith.constant 0 : index
    %29 = vector.load %arg7[%c0_16, %c0_17] : memref<2x1xf32, #tpu.memory_space<vmem>>, vector<2x1xf32>
    tpu.vector_store %arg7[%c0_16, %c0_17], %28 {strides = array<i32>} : memref<2x1xf32, #tpu.memory_space<vmem>>, vector<2x1xf32>,
    return
  }
  func.func @transform_0(%arg0: i32) -> (i32, i32, i32) {
    %c0_i32 = arith.constant 0 : i32
    %c0_i32_0 = arith.constant 0 : i32
    %c0_i32_1 = arith.constant 0 : i32
    %c0_i32_2 = arith.constant 0 : i32
    return %c0_i32, %c0_i32_0, %c0_i32_1 : i32, i32, i32
  }
  func.func @transform_1(%arg0: i32) -> (i32, i32) {
    %c0_i32 = arith.constant 0 : i32
    %c0_i32_0 = arith.constant 0 : i32
    %c0_i32_1 = arith.constant 0 : i32
    return %c0_i32, %c0_i32_0 : i32, i32
  }
  func.func @transform_2(%arg0: i32) -> (i32, i32) {
    %c0_i32 = arith.constant 0 : i32
    %c0_i32_0 = arith.constant 0 : i32
    %c0_i32_1 = arith.constant 0 : i32
    return %c0_i32, %c0_i32_0 : i32, i32
  }
  func.func @transform_3(%arg0: i32) -> (i32, i32) {
    %c0_i32 = arith.constant 0 : i32
    %c0_i32_0 = arith.constant 0 : i32
    %c0_i32_1 = arith.constant 0 : i32
    return %c0_i32, %c0_i32_0 : i32, i32
  }
  func.func @transform_4(%arg0: i32) -> (i32, i32) {
    %c0_i32 = arith.constant 0 : i32
    %c0_i32_0 = arith.constant 0 : i32
    %c0_i32_1 = arith.constant 0 : i32
    return %c0_i32, %c0_i32_0 : i32, i32
  }
  func.func @transform_5(%arg0: i32) -> (i32, i32) {
    %c0_i32 = arith.constant 0 : i32
    %c0_i32_0 = arith.constant 0 : i32
    %c0_i32_1 = arith.constant 0 : i32
    return %c0_i32, %c0_i32_0 : i32, i32
  }
  func.func @transform_6(%arg0: i32) -> (i32, i32) {
    %c0_i32 = arith.constant 0 : i32
    %c0_i32_0 = arith.constant 0 : i32
    %c0_i32_1 = arith.constant 0 : i32
    return %c0_i32, %c0_i32_0 : i32, i32
  }
}

</mosaic_0001>

<llo_original>
// kernel: rot_model_forward.2
$region0: #{rot_model_forward.2}
  #allocation0 [shape = 'u32[]', space=smem, size = 0x4, offset = 0x4, fixed_abs, tag = 'smem constant byte address 0x4 - core index']
  #allocation1 [shape = 'u32[144,128]{1,0:T(1,128)}', space=vmem, size = 0x12000, scoped, tag = 'internal scratch']
  #allocation2 [shape = 'f32[8,256]{1,0:T(8,128)}', space=vmem, size = 0x2000, scoped, tag = 'scratch operand']
  %s0 = inlined_call_operand.vmem [shape: bf16[2,256,32], index: 0, kind: input, shape index: {}]
  %s1 = inlined_call_operand.vmem [shape: bf16[32,32], index: 1, kind: input, shape index: {}]
  %s2 = inlined_call_operand.vmem [shape: bf16[1,32], index: 2, kind: input, shape index: {}]
  %s3 = inlined_call_operand.vmem [shape: bf16[32,256], index: 3, kind: input, shape index: {}]
  %s4 = inlined_call_operand.vmem [shape: bf16[1,256], index: 4, kind: input, shape index: {}]
  %s5 = inlined_call_operand.vmem [shape: f32[2,1,512], index: 5, kind: output, shape index: {}]
  %s6 = sld [smem:[#allocation0]]
  $region61: #{rot_model_forward.2} parent=0
    _
  %s8 = ssub.s32 1, %s6
  %s9 = scalar_select 0, %s8, %s6
  loop: start=0, step=1, limit=10
  $region2: #{rot_model_forward.2} parent=0 // loop_pre_header
    _
  $region3: #{rot_model_forward.2} parent=0 // loop_header
    %s11 = sphi 0, %s15
    %p12 = scmp.ge.s32.totalorder %s11, 10
    %s18 = sphi 0, %s37
    %s19 = sphi 0, %s33
    %s20 = sphi 0, %s29
    %s21 = sphi 0, %s18
    %s22 = sphi 0, %s19
    %s23 = sphi 0, %s20
    %s24 = sphi 0, %s21
    %s25 = sphi 0, %s22
    %s26 = sphi 0, %s23
    %s46 = sphi 0, %s48
    %s49 = sphi 0, %s46
    %s50 = sphi 0, %s49
    %s66 = sphi 0, %s50
    %s70 = sphi 0, %s70
    %s72 = sphi 0, %s70
    %s73 = sphi 0, %s72
    %s87 = sphi 0, %s73
    %s91 = sphi 0, %s91
    %s93 = sphi 0, %s91
    %s94 = sphi 0, %s93
    %s108 = sphi 0, %s94
    %s112 = sphi 0, %s112
    %s114 = sphi 0, %s112
    %s115 = sphi 0, %s114
    %s129 = sphi 0, %s115
    %s133 = sphi 0, %s133
    %s135 = sphi 0, %s133
    %s136 = sphi 0, %s135
    %s150 = sphi 0, %s136
    %s158 = sphi 0, %s160
    %s161 = sphi 0, %s158
    %s162 = sphi 0, %s161
    %s178 = sphi 0, %s162
  $region4: #{rot_model_forward.2} parent=0 // loop_header_branch
    %14 = sbr.rel (%p12) target = $region8
  $region5: #{rot_model_forward.2} parent=0 // loop_body
    %s16 = ssub.s32 %s11, 1
    %s17 = ssub.s32 %s11, 2
    %s27 = sadd.s32 1, %s20
    %p28 = scmp.ge.s32.totalorder %s27, 2
    %s29 = scalar_select %p28, 0, %s27
    %s30 = sadd.s32 1, %s19
    %s31 = scalar_select %p28, %s30, %s19
    %p32 = scmp.ge.s32.totalorder %s31, 2
    %s33 = scalar_select %p32, 0, %s31
    %s34 = sadd.s32 1, %s18
    %s35 = scalar_select %p32, %s34, %s18
    %p36 = scmp.ge.s32.totalorder %s35, 2
    %s37 = scalar_select %p36, 0, %s35
    %s38 = smul.u32 %s19, 2
    %s39 = sadd.s32 %s38, %s20
    %s40 = smul.u32 %s33, 2
    %s41 = sadd.s32 %s40, %s29
    %s42 = ssub.s32 %s18, %s37
    %s43 = ssub.s32 %s39, %s41
    %s44 = sor.u32 %s42, %s43
    %p45 = scmp.eq.s32.totalorder %s44, 0
    %s47 = sadd.s32 %s46, 1
    %s48 = scalar_select %p45, %s46, %s47
    %p51 = pneg %p45
    %p52 = scmp.eq.s32.totalorder %s11, 7
    %p53 = por %p51, %p52
    %p54 = scmp.ne.s32.totalorder %s46, %s49
    %p55 = scmp.eq.s32.totalorder %s11, 0
    %p56 = por %p54, %p55
    %p57 = scmp.ne.s32.totalorder %s46, %s49
    %p58 = scmp.eq.s32.totalorder %s16, 7
    %p59 = por %p57, %p58
    %p60 = scmp.ne.s32.totalorder %s49, %s50
    %p61 = scmp.eq.s32.totalorder %s16, 0
    %p62 = por %p60, %p61
    %p63 = scmp.ne.s32.totalorder %s49, %s50
    %p64 = scmp.eq.s32.totalorder %s17, 7
    %p65 = por %p63, %p64
    %p67 = scmp.ne.s32.totalorder %s50, %s66
    %p68 = scmp.eq.s32.totalorder %s17, 0
    %p69 = por %p67, %p68
    %s71 = sadd.s32 %s70, 1
    %p74 = scmp.eq.s32.totalorder %s11, 7
    %p75 = scmp.ne.s32.totalorder %s70, %s72
    %p76 = scmp.eq.s32.totalorder %s11, 0
    %p77 = por %p75, %p76
    %p78 = scmp.ne.s32.totalorder %s70, %s72
    %p79 = scmp.eq.s32.totalorder %s16, 7
    %p80 = por %p78, %p79
    %p81 = scmp.ne.s32.totalorder %s72, %s73
    %p82 = scmp.eq.s32.totalorder %s16, 0
    %p83 = por %p81, %p82
    %p84 = scmp.ne.s32.totalorder %s72, %s73
    %p85 = scmp.eq.s32.totalorder %s17, 7
    %p86 = por %p84, %p85
    %p88 = scmp.ne.s32.totalorder %s73, %s87
    %p89 = scmp.eq.s32.totalorder %s17, 0
    %p90 = por %p88, %p89
    %s92 = sadd.s32 %s91, 1
    %p95 = scmp.eq.s32.totalorder %s11, 7
    %p96 = scmp.ne.s32.totalorder %s91, %s93
    %p97 = scmp.eq.s32.totalorder %s11, 0
    %p98 = por %p96, %p97
    %p99 = scmp.ne.s32.totalorder %s91, %s93
    %p100 = scmp.eq.s32.totalorder %s16, 7
    %p101 = por %p99, %p100
    %p102 = scmp.ne.s32.totalorder %s93, %s94
    %p103 = scmp.eq.s32.totalorder %s16, 0
    %p104 = por %p102, %p103
    %p105 = scmp.ne.s32.totalorder %s93, %s94
    %p106 = scmp.eq.s32.totalorder %s17, 7
    %p107 = por %p105, %p106
    %p109 = scmp.ne.s32.totalorder %s94, %s108
    %p110 = scmp.eq.s32.totalorder %s17, 0
    %p111 = por %p109, %p110
    %s113 = sadd.s32 %s112, 1
    %p116 = scmp.eq.s32.totalorder %s11, 7
    %p117 = scmp.ne.s32.totalorder %s112, %s114
    %p118 = scmp.eq.s32.totalorder %s11, 0
    %p119 = por %p117, %p118
    %p120 = scmp.ne.s32.totalorder %s112, %s114
    %p121 = scmp.eq.s32.totalorder %s16, 7
    %p122 = por %p120, %p121
    %p123 = scmp.ne.s32.totalorder %s114, %s115
    %p124 = scmp.eq.s32.totalorder %s16, 0
    %p125 = por %p123, %p124
    %p126 = scmp.ne.s32.totalorder %s114, %s115
    %p127 = scmp.eq.s32.totalorder %s17, 7
    %p128 = por %p126, %p127
    %p130 = scmp.ne.s32.totalorder %s115, %s129
    %p131 = scmp.eq.s32.totalorder %s17, 0
    %p132 = por %p130, %p131
    %s134 = sadd.s32 %s133, 1
    %p137 = scmp.eq.s32.totalorder %s11, 7
    %p138 = scmp.ne.s32.totalorder %s133, %s135
    %p139 = scmp.eq.s32.totalorder %s11, 0
    %p140 = por %p138, %p139
    %p141 = scmp.ne.s32.totalorder %s133, %s135
    %p142 = scmp.eq.s32.totalorder %s16, 7
    %p143 = por %p141, %p142
    %p144 = scmp.ne.s32.totalorder %s135, %s136
    %p145 = scmp.eq.s32.totalorder %s16, 0
    %p146 = por %p144, %p145
    %p147 = scmp.ne.s32.totalorder %s135, %s136
    %p148 = scmp.eq.s32.totalorder %s17, 7
    %p149 = por %p147, %p148
    %p151 = scmp.ne.s32.totalorder %s136, %s150
    %p152 = scmp.eq.s32.totalorder %s17, 0
    %p153 = por %p151, %p152
    %s154 = ssub.s32 %s18, %s37
    %s155 = ssub.s32 %s19, %s33
    %s156 = sor.u32 %s154, %s155
    %p157 = scmp.eq.s32.totalorder %s156, 0
    %s159 = sadd.s32 %s158, 1
    %s160 = scalar_select %p157, %s158, %s159
    %p163 = pneg %p157
    %p164 = scmp.eq.s32.totalorder %s11, 7
    %p165 = por %p163, %p164
    %p166 = scmp.ne.s32.totalorder %s158, %s161
    %p167 = scmp.eq.s32.totalorder %s11, 0
    %p168 = por %p166, %p167
    %p169 = scmp.ne.s32.totalorder %s158, %s161
    %p170 = scmp.eq.s32.totalorder %s16, 7
    %p171 = por %p169, %p170
    %p172 = scmp.ne.s32.totalorder %s161, %s162
    %p173 = scmp.eq.s32.totalorder %s16, 0
    %p174 = por %p172, %p173
    %p175 = scmp.ne.s32.totalorder %s161, %s162
    %p176 = scmp.eq.s32.totalorder %s17, 7
    %p177 = por %p175, %p176
    %p179 = scmp.ne.s32.totalorder %s162, %s178
    %p180 = scmp.eq.s32.totalorder %s17, 0
    %p181 = por %p179, %p180
    %p182 = scmp.le.s32.totalorder 1, %s11
    %p183 = scmp.lt.s32.totalorder %s11, 9
    %p184 = pnand %p182, %p183
    %p185 = pneg %p184
    // Predicated region
    $region9: #{rot_model_forward.2} parent=5 // pred_check
      _
    $region10: #{rot_model_forward.2} parent=5 // pred_check_branch
      %187 = sbr.rel (%p184) target = $region12
    $region11: #{rot_model_forward.2} parent=5 // pred_region
      %s188 = ssub.s32 %s11, 1
      // Predicated region
      $region13: #{rot_model_forward.2} parent=11 // pred_check
        %p189 = pneg %p83
      $region14: #{rot_model_forward.2} parent=11 // pred_check_branch
        %191 = sbr.rel (%p189) target = $region16
      $region15: #{rot_model_forward.2} parent=11 // pred_region
        _
      $region16: #{rot_model_forward.2} parent=11 // pred_fallthru
        _
      // Predicated region
      $region17: #{rot_model_forward.2} parent=11 // pred_check
        %p192 = pneg %p104
      $region18: #{rot_model_forward.2} parent=11 // pred_check_branch
        %194 = sbr.rel (%p192) target = $region20
      $region19: #{rot_model_forward.2} parent=11 // pred_region
        _
      $region20: #{rot_model_forward.2} parent=11 // pred_fallthru
        _
      // Predicated region
      $region21: #{rot_model_forward.2} parent=11 // pred_check
        %p195 = pneg %p125
      $region22: #{rot_model_forward.2} parent=11 // pred_check_branch
        %197 = sbr.rel (%p195) target = $region24
      $region23: #{rot_model_forward.2} parent=11 // pred_region
        _
      $region24: #{rot_model_forward.2} parent=11 // pred_fallthru
        _
      // Predicated region
      $region25: #{rot_model_forward.2} parent=11 // pred_check
        %p198 = pneg %p146
      $region26: #{rot_model_forward.2} parent=11 // pred_check_branch
        %200 = sbr.rel (%p198) target = $region28
      $region27: #{rot_model_forward.2} parent=11 // pred_region
        _
      $region28: #{rot_model_forward.2} parent=11 // pred_fallthru
        _
    $region12: #{rot_model_forward.2} parent=5 // pred_fallthru
      _
    %p201 = scmp.lt.s32.totalorder %s11, 8
    // Predicated region
    $region29: #{rot_model_forward.2} parent=5 // pred_check
      %p202 = pneg %p201
    $region30: #{rot_model_forward.2} parent=5 // pred_check_branch
      %204 = sbr.rel (%p202) target = $region32
    $region31: #{rot_model_forward.2} parent=5 // pred_region
      // Predicated region
      $region33: #{rot_model_forward.2} parent=31 // pred_check
        %p205 = pneg %p56
      $region34: #{rot_model_forward.2} parent=31 // pred_check_branch
        %207 = sbr.rel (%p205) target = $region36
      $region35: #{rot_model_forward.2} parent=31 // pred_region
        %s208 = smul.u32 %s19, 2
        %s209 = sadd.s32 %s208, %s20
        %s210 = smul.u32 8, %s209
        %p211 = scmp.lt.s32.totalorder %s18, 1
        %s212 = scalar_select %p211, %s18, 1
        %p213 = scmp.lt.s32.totalorder %s210, 31
        %s214 = scalar_select %p213, %s210, 31
        %s215 = smul.addr %s212, 32
        %s216 = sadd.s32 %s214, %s215
        %s217 = smul.addr %s216, 4
        %s218 = scalar_lea.vmem %s0, %s217
        %s219 = smul.u32 %s19, 2
        %s220 = sadd.s32 %s219, %s20
        %s221 = smul.u32 8, %s220
      $region36: #{rot_model_forward.2} parent=31 // pred_fallthru
        _
    $region32: #{rot_model_forward.2} parent=5 // pred_fallthru
      _
    %p222 = scmp.le.s32.totalorder 1, %s11
    %p223 = scmp.lt.s32.totalorder %s11, 9
    %p224 = pnand %p222, %p223
    %p225 = pneg %p224
    // Predicated region
    $region37: #{rot_model_forward.2} parent=5 // pred_check
      _
    $region38: #{rot_model_forward.2} parent=5 // pred_check_branch
      %227 = sbr.rel (%p224) target = $region40
    $region39: #{rot_model_forward.2} parent=5 // pred_region
      %s228 = ssub.s32 %s11, 1
      %s229 = smul.u32 %s22, 2
      %s230 = sadd.s32 %s229, %s23
      %s231 = smul.u32 8, %s230
      %p232 = scmp.lt.s32.totalorder %s21, 1
      %s233 = scalar_select %p232, %s21, 1
      %p234 = scmp.lt.s32.totalorder %s231, 31
      %s235 = scalar_select %p234, %s231, 31
      %s236 = smul.addr %s233, 32
      %s237 = sadd.s32 %s235, %s236
      %s238 = smul.addr %s237, 4
      %s239 = scalar_lea.vmem %s0, %s238
      %p240 = pneg %p62
      %p241 = pneg %p59
      %p242 = pneg %p83
      %p243 = pneg %p80
      %p244 = pneg %p104
      %p245 = pneg %p101
      %p246 = pneg %p125
      %p247 = pneg %p122
      %p248 = pneg %p146
      %p249 = pneg %p143
      %p250 = pneg %p174
      %p251 = pneg %p171
      %s252 = smul.u32 2, %s22
      %p253 = scmp.lt.s32.totalorder %s21, 1
      %s254 = scalar_select %p253, %s21, 1
      %p255 = scmp.lt.s32.totalorder %s252, 3
      %s256 = scalar_select %p255, %s252, 3
      %s257 = smul.addr %s254, 4
      %s258 = sadd.s32 %s256, %s257
      %s259 = scalar_lea.vmem %s5, %s258
      %s260 = smul.u32 %s22, 2
      %s261 = sadd.s32 %s260, %s23
      %s262 = smul.u32 8, %s261
      %p263 = scmp.lt.s32.totalorder %s21, 1
      %s264 = scalar_select %p263, %s21, 1
      %p265 = scmp.lt.s32.totalorder %s262, 31
      %s266 = scalar_select %p265, %s262, 31
      %s267 = smul.addr %s264, 32
      %s268 = sadd.s32 %s266, %s267
      %s269 = smul.addr %s268, 4
      %s270 = scalar_lea.vmem %s0, %s269
      %s271 = smul.u32 %s22, 2
      %s272 = sadd.s32 %s271, %s23
      %s273 = smul.u32 8, %s272
      %s274 = smul.u32 2, %s22
      %p275 = scmp.lt.s32.totalorder %s21, 1
      %s276 = scalar_select %p275, %s21, 1
      %p277 = scmp.lt.s32.totalorder %s274, 3
      %s278 = scalar_select %p277, %s274, 3
      %s279 = smul.addr %s276, 4
      %s280 = sadd.s32 %s278, %s279
      %s281 = scalar_lea.vmem %s5, %s280
      %s282 = smul.u32 2, %s22
      %p286 = scmp.eq.s32.totalorder %s23, 0
      // Predicated region
      $region41: #{rot_model_forward.2} parent=39 // pred_check
        %p287 = pneg %p286
      $region42: #{rot_model_forward.2} parent=39 // pred_check_branch
        %289 = sbr.rel (%p287) target = $region44
      $region43: #{rot_model_forward.2} parent=39 // pred_region
        %290 = vst [vmem:[#allocation2] sm:$0xff] 0.0
        %291 = vst [vmem:[#allocation2 + $0x8] sm:$0xff] 0.0
      $region44: #{rot_model_forward.2} parent=39 // pred_fallthru
        _
      %v292 = vld [vmem:[%s270] sm:$0xf]
      %v293 = vld [vmem:[%s270 + $0x4] sm:$0xf]
      %v294 = vld [vmem:[%s270 + $0x8] sm:$0xf]
      %v295 = vld [vmem:[%s270 + $0xc] sm:$0xf]
      %v296 = vld [vmem:[%s270 + $0x10] sm:$0xf]
      %v297 = vld [vmem:[%s270 + $0x14] sm:$0xf]
      %v298 = vld [vmem:[%s270 + $0x18] sm:$0xf]
      %v299 = vld [vmem:[%s270 + $0x1c] sm:$0xf]
      %v300 = vld [vmem:[%s1] sm:$0xf]
      %v301 = vld [vmem:[%s1 + $0x4] sm:$0xf]
      %v302 = vld [vmem:[%s1 + $0x8] sm:$0xf]
      %v303 = vld [vmem:[%s1 + $0xc] sm:$0xf]
      %v312 = vunpack.c.l.b16 %v292
      %v313 = vunpack.c.l.b16 %v293
      %v314 = vunpack.c.l.b16 %v294
      %v315 = vunpack.c.l.b16 %v295
      %v316 = vunpack.c.l.b16 %v296
      %v317 = vunpack.c.l.b16 %v297
      %v318 = vunpack.c.l.b16 %v298
      %v319 = vunpack.c.l.b16 %v299
      %v320 = vpack.c.b16 %v313, %v312
      %v321 = vpack.c.b16 %v315, %v314
      %v322 = vpack.c.b16 %v317, %v316
      %v323 = vpack.c.b16 %v319, %v318
      %v328 = vunpack.c.l.b16 %v300
      %v329 = vunpack.c.l.b16 %v301
      %v330 = vunpack.c.l.b16 %v302
      %v331 = vunpack.c.l.b16 %v303
      %v332 = vpack.c.b16 %v329, %v328
      %v333 = vpack.c.b16 %v331, %v330
      %vm336 = vcmask 261120
      %v338 = vsel %vm336, %v320, 0
      %v341 = vsel %vm336, %v321, 0
      %v344 = vsel %vm336, %v322, 0
      %v347 = vsel %vm336, %v323, 0
      %349 = vmatprep.subr.bf16.mxu0 0
      %350 = vmatpush1.bf16.msra.mxu0 %v332
      %351 = vmatprep.subr.bf16.mxu0 0
      %352 = vmatpush1.bf16.msra.mxu0 %v333
      %353 = vmatprep.subr.bf16.mxu0 0
      %354 = vmatpush1.bf16.msra.mxu0 0
      %355 = vmatprep.subr.bf16.mxu0 0
      %356 = vmatpush1.bf16.msra.mxu0 0
      %357 = vmatprep.subr.bf16.mxu0 0
      %358 = vmatpush1.bf16.msra.mxu0 0
      %359 = vmatprep.subr.bf16.mxu0 0
      %360 = vmatpush1.bf16.msra.mxu0 0
      %361 = vmatprep.subr.bf16.mxu0 0
      %362 = vmatpush1.bf16.msra.mxu0 0
      %363 = vmatprep.subr.bf16.mxu0 0
      %364 = vmatpush1.bf16.msra.mxu0 0
      %365 = vmatprep.subr.bf16.mxu0 0
      %366 = vmatpush1.bf16.msra.mxu0 0
      %367 = vmatprep.subr.bf16.mxu0 0
      %368 = vmatpush1.bf16.msra.mxu0 0
      %369 = vmatprep.subr.bf16.mxu0 0
      %370 = vmatpush1.bf16.msra.mxu0 0
      %371 = vmatprep.subr.bf16.mxu0 0
      %372 = vmatpush1.bf16.msra.mxu0 0
      %373 = vmatprep.subr.bf16.mxu0 0
      %374 = vmatpush1.bf16.msra.mxu0 0
      %375 = vmatprep.subr.bf16.mxu0 0
      %376 = vmatpush1.bf16.msra.mxu0 0
      %377 = vmatprep.subr.bf16.mxu0 0
      %378 = vmatpush1.bf16.msra.mxu0 0
      %379 = vmatprep.subr.bf16.mxu0 0
      %380 = vmatpush1.bf16.msra.mxu0 0
      %381 = vmatprep.mubr.bf16.mxu0 0
      %382 = vmatmul.mubr.bf16.gmra.mrb[0].mxu0 %v338
      %v383 = vpop.f32.mrb[0].mxu0
      %v384 = vadd.f32 0.0, %v383
      %v385 = vpop.f32.mrb[0].mxu0
      %v386 = vpop.f32.mrb[0].mxu0
      %v387 = vadd.f32 0.0, %v386
      %v388 = vpop.f32.mrb[0].mxu0
      %389 = vmatprep.mubr.bf16.mxu0 0
      %390 = vmatmul.mubr.bf16.gmra.mrb[0].mxu0 %v341
      %v391 = vpop.f32.mrb[0].mxu0
      %v392 = vadd.f32 0.0, %v391
      %v393 = vpop.f32.mrb[0].mxu0
      %v394 = vpop.f32.mrb[0].mxu0
      %v395 = vadd.f32 0.0, %v394
      %v396 = vpop.f32.mrb[0].mxu0
      %397 = vmatprep.mubr.bf16.mxu0 0
      %398 = vmatmul.mubr.bf16.gmra.mrb[0].mxu0 %v344
      %v399 = vpop.f32.mrb[0].mxu0
      %v400 = vadd.f32 0.0, %v399
      %v401 = vpop.f32.mrb[0].mxu0
      %v402 = vpop.f32.mrb[0].mxu0
      %v403 = vadd.f32 0.0, %v402
      %v404 = vpop.f32.mrb[0].mxu0
      %405 = vmatprep.mubr.bf16.mxu0 0
      %406 = vmatmul.mubr.bf16.gmra.mrb[0].mxu0 %v347
      %v407 = vpop.f32.mrb[0].mxu0
      %v408 = vadd.f32 0.0, %v407
      %v409 = vpop.f32.mrb[0].mxu0
      %v410 = vpop.f32.mrb[0].mxu0
      %v411 = vadd.f32 0.0, %v410
      %v412 = vpop.f32.mrb[0].mxu0
      %413 = vdwg.mxu0
      %v414 = vpack.c.bf16 %v387, %v384
      %v415 = vpack.c.bf16 %v395, %v392
      %v416 = vpack.c.bf16 %v403, %v400
      %v417 = vpack.c.bf16 %v411, %v408
      %v418 = vld [vmem:[%s2] sm:$0x1]
      %v420 = vpack.i.b16 %v418, %v418
      %v422 = vlaneseq
      %v423 = vshrl.u32 %v422, 7
      %v424 = vsub.s32 0, %v423
      %v425 = vrot.slane %v420, %v424
      %v426 = vadd.bf16 %v414, %v425
      %v427 = vadd.bf16 %v415, %v425
      %v428 = vadd.bf16 %v416, %v425
      %v429 = vadd.bf16 %v417, %v425
      %v430 = vmul.bf16 %v426, 1056980736
      %v431 = vmul.bf16 %v427, 1056980736
      %v432 = vmul.bf16 %v428, 1056980736
      %v433 = vmul.bf16 %v429, 1056980736
      %v434 = vtanh.bf16.pop %v430
      %v435 = vtanh.bf16.pop %v431
      %v436 = vtanh.bf16.pop %v432
      %v437 = vtanh.bf16.pop %v433
      %v438 = vadd.bf16 %v434, 1065369472
      %v439 = vadd.bf16 %v435, 1065369472
      %v440 = vadd.bf16 %v436, 1065369472
      %v441 = vadd.bf16 %v437, 1065369472
      %v442 = vmul.bf16 %v430, %v438
      %v443 = vmul.bf16 %v431, %v439
      %v444 = vmul.bf16 %v432, %v440
      %v445 = vmul.bf16 %v433, %v441
      %v446 = vld [vmem:[%s3] sm:$0xff]
      %v447 = vld [vmem:[%s3 + $0x8] sm:$0xff]
      %v448 = vld [vmem:[%s3 + $0x10] sm:$0xff]
      %v449 = vld [vmem:[%s3 + $0x18] sm:$0xff]
      %v454 = vunpack.c.l.b16 %v446
      %v455 = vunpack.c.h.b16 %v446
      %v456 = vunpack.c.l.b16 %v447
      %v457 = vunpack.c.h.b16 %v447
      %v458 = vunpack.c.l.b16 %v448
      %v459 = vunpack.c.h.b16 %v448
      %v460 = vunpack.c.l.b16 %v449
      %v461 = vunpack.c.h.b16 %v449
      %v462 = vpack.c.b16 %v456, %v454
      %v463 = vpack.c.b16 %v457, %v455
      %v464 = vpack.c.b16 %v460, %v458
      %v465 = vpack.c.b16 %v461, %v459
      %v471 = vsel %vm336, %v442, 0
      %v474 = vsel %vm336, %v443, 0
      %v477 = vsel %vm336, %v444, 0
      %v480 = vsel %vm336, %v445, 0
      %482 = vmatprep.subr.bf16.mxu0 %v463
      %483 = vmatpush1.bf16.msra.mxu0 %v462
      %484 = vmatprep.subr.bf16.mxu0 %v465
      %485 = vmatpush1.bf16.msra.mxu0 %v464
      %486 = vmatprep.subr.bf16.mxu0 0
      %487 = vmatpush1.bf16.msra.mxu0 0
      %488 = vmatprep.subr.bf16.mxu0 0
      %489 = vmatpush1.bf16.msra.mxu0 0
      %490 = vmatprep.subr.bf16.mxu0 0
      %491 = vmatpush1.bf16.msra.mxu0 0
      %492 = vmatprep.subr.bf16.mxu0 0
      %493 = vmatpush1.bf16.msra.mxu0 0
      %494 = vmatprep.subr.bf16.mxu0 0
      %495 = vmatpush1.bf16.msra.mxu0 0
      %496 = vmatprep.subr.bf16.mxu0 0
      %497 = vmatpush1.bf16.msra.mxu0 0
      %498 = vmatprep.subr.bf16.mxu0 0
      %499 = vmatpush1.bf16.msra.mxu0 0
      %500 = vmatprep.subr.bf16.mxu0 0
      %501 = vmatpush1.bf16.msra.mxu0 0
      %502 = vmatprep.subr.bf16.mxu0 0
      %503 = vmatpush1.bf16.msra.mxu0 0
      %504 = vmatprep.subr.bf16.mxu0 0
      %505 = vmatpush1.bf16.msra.mxu0 0
      %506 = vmatprep.subr.bf16.mxu0 0
      %507 = vmatpush1.bf16.msra.mxu0 0
      %508 = vmatprep.subr.bf16.mxu0 0
      %509 = vmatpush1.bf16.msra.mxu0 0
      %510 = vmatprep.subr.bf16.mxu0 0
      %511 = vmatpush1.bf16.msra.mxu0 0
      %512 = vmatprep.subr.bf16.mxu0 0
      %513 = vmatpush1.bf16.msra.mxu0 0
      %514 = vmatprep.mubr.bf16.mxu0 0
      %515 = vmatmul.mubr.bf16.gmra.mrb[0].mxu0 %v471
      %v516 = vpop.f32.mrb[0].mxu0
      %v517 = vadd.f32 0.0, %v516
      %v518 = vpop.f32.mrb[0].mxu0
      %v519 = vadd.f32 0.0, %v518
      %v520 = vpop.f32.mrb[0].mxu0
      %v521 = vadd.f32 0.0, %v520
      %v522 = vpop.f32.mrb[0].mxu0
      %v523 = vadd.f32 0.0, %v522
      %524 = vmatprep.mubr.bf16.mxu0 0
      %525 = vmatmul.mubr.bf16.gmra.mrb[0].mxu0 %v474
      %v526 = vpop.f32.mrb[0].mxu0
      %v527 = vadd.f32 0.0, %v526
      %v528 = vpop.f32.mrb[0].mxu0
      %v529 = vadd.f32 0.0, %v528
      %v530 = vpop.f32.mrb[0].mxu0
      %v531 = vadd.f32 0.0, %v530
      %v532 = vpop.f32.mrb[0].mxu0
      %v533 = vadd.f32 0.0, %v532
      %534 = vmatprep.mubr.bf16.mxu0 0
      %535 = vmatmul.mubr.bf16.gmra.mrb[0].mxu0 %v477
      %v536 = vpop.f32.mrb[0].mxu0
      %v537 = vadd.f32 0.0, %v536
      %v538 = vpop.f32.mrb[0].mxu0
      %v539 = vadd.f32 0.0, %v538
      %v540 = vpop.f32.mrb[0].mxu0
      %v541 = vadd.f32 0.0, %v540
      %v542 = vpop.f32.mrb[0].mxu0
      %v543 = vadd.f32 0.0, %v542
      %544 = vmatprep.mubr.bf16.mxu0 0
      %545 = vmatmul.mubr.bf16.gmra.mrb[0].mxu0 %v480
      %v546 = vpop.f32.mrb[0].mxu0
      %v547 = vadd.f32 0.0, %v546
      %v548 = vpop.f32.mrb[0].mxu0
      %v549 = vadd.f32 0.0, %v548
      %v550 = vpop.f32.mrb[0].mxu0
      %v551 = vadd.f32 0.0, %v550
      %v552 = vpop.f32.mrb[0].mxu0
      %v553 = vadd.f32 0.0, %v552
      %554 = vdwg.mxu0
      %v555 = vpack.c.bf16 %v521, %v517
      %v556 = vpack.c.bf16 %v523, %v519
      %v557 = vpack.c.bf16 %v531, %v527
      %v558 = vpack.c.bf16 %v533, %v529
      %v559 = vpack.c.bf16 %v541, %v537
      %v560 = vpack.c.bf16 %v543, %v539
      %v561 = vpack.c.bf16 %v551, %v547
      %v562 = vpack.c.bf16 %v553, %v549
      %v563 = vld [vmem:[%s4] sm:$0x3]
      %v566 = vunpack.c.l.s4 1966171168
      %v567 = vunpack.c.0.s8 %v566
      %v568 = vlaneseq
      %v569 = vshrl.u32 %v568, 7
      %v570 = vsub.s32 %v567, %v569
      %v571 = vrot.slane %v563, %v570
      %v572 = vcombine.high %v571, %v571
      %v574 = vunpack.c.l.s4 1966171168
      %v575 = vunpack.c.0.s8 %v574
      %v576 = vlaneseq
      %v577 = vshrl.u32 %v576, 7
      %v578 = vsub.s32 %v575, %v577
      %v579 = vrot.slane %v571, %v578
      %v581 = vunpack.c.l.s4 1966171168
      %v582 = vunpack.c.0.s8 %v581
      %v583 = vlaneseq
      %v584 = vshrl.u32 %v583, 7
      %v585 = vsub.s32 %v582, %v584
      %v586 = vrot.slane %v572, %v585
      %v588 = vpack.i.b16 %v579, %v579
      %v590 = vlaneseq
      %v591 = vshrl.u32 %v590, 7
      %v592 = vsub.s32 0, %v591
      %v593 = vrot.slane %v588, %v592
      %v595 = vpack.i.b16 %v586, %v586
      %v597 = vlaneseq
      %v598 = vshrl.u32 %v597, 7
      %v599 = vsub.s32 0, %v598
      %v600 = vrot.slane %v595, %v599
      %v601 = vadd.bf16 %v555, %v593
      %v602 = vadd.bf16 %v556, %v600
      %v603 = vadd.bf16 %v557, %v593
      %v604 = vadd.bf16 %v558, %v600
      %v605 = vadd.bf16 %v559, %v593
      %v606 = vadd.bf16 %v560, %v600
      %v607 = vadd.bf16 %v561, %v593
      %v608 = vadd.bf16 %v562, %v600
      %v609 = vmul.bf16 %v601, 1056980736
      %v610 = vmul.bf16 %v602, 1056980736
      %v611 = vmul.bf16 %v603, 1056980736
      %v612 = vmul.bf16 %v604, 1056980736
      %v613 = vmul.bf16 %v605, 1056980736
      %v614 = vmul.bf16 %v606, 1056980736
      %v615 = vmul.bf16 %v607, 1056980736
      %v616 = vmul.bf16 %v608, 1056980736
      %v617 = vtanh.bf16.pop %v609
      %v618 = vtanh.bf16.pop %v610
      %v619 = vtanh.bf16.pop %v611
      %v620 = vtanh.bf16.pop %v612
      %v621 = vtanh.bf16.pop %v613
      %v622 = vtanh.bf16.pop %v614
      %v623 = vtanh.bf16.pop %v615
      %v624 = vtanh.bf16.pop %v616
      %v625 = vadd.bf16 %v617, 1065369472
      %v626 = vadd.bf16 %v618, 1065369472
      %v627 = vadd.bf16 %v619, 1065369472
      %v628 = vadd.bf16 %v620, 1065369472
      %v629 = vadd.bf16 %v621, 1065369472
      %v630 = vadd.bf16 %v622, 1065369472
      %v631 = vadd.bf16 %v623, 1065369472
      %v632 = vadd.bf16 %v624, 1065369472
      %v633 = vmul.bf16 %v609, %v625
      %v634 = vmul.bf16 %v610, %v626
      %v635 = vmul.bf16 %v611, %v627
      %v636 = vmul.bf16 %v612, %v628
      %v637 = vmul.bf16 %v613, %v629
      %v638 = vmul.bf16 %v614, %v630
      %v639 = vmul.bf16 %v615, %v631
      %v640 = vmul.bf16 %v616, %v632
      %v641 = vunpack.c.l.bf16 %v633
      %v642 = vunpack.c.l.bf16 %v634
      %v643 = vunpack.c.h.bf16 %v633
      %v644 = vunpack.c.h.bf16 %v634
      %v645 = vunpack.c.l.bf16 %v635
      %v646 = vunpack.c.l.bf16 %v636
      %v647 = vunpack.c.h.bf16 %v635
      %v648 = vunpack.c.h.bf16 %v636
      %v649 = vunpack.c.l.bf16 %v637
      %v650 = vunpack.c.l.bf16 %v638
      %v651 = vunpack.c.h.bf16 %v637
      %v652 = vunpack.c.h.bf16 %v638
      %v653 = vunpack.c.l.bf16 %v639
      %v654 = vunpack.c.l.bf16 %v640
      %v655 = vunpack.c.h.bf16 %v639
      %v656 = vunpack.c.h.bf16 %v640
      %v657 = vld [vmem:[#allocation2] sm:$0xff]
      %v658 = vld [vmem:[#allocation2 + $0x8] sm:$0xff]
      %v659 = vadd.f32 %v641, %v643
      %v660 = vadd.f32 %v659, %v645
      %v661 = vadd.f32 %v660, %v647
      %v662 = vadd.f32 %v661, %v649
      %v663 = vadd.f32 %v662, %v651
      %v664 = vadd.f32 %v663, %v653
      %v665 = vadd.f32 %v664, %v655
      %v666 = vadd.f32 %v642, %v644
      %v667 = vadd.f32 %v666, %v646
      %v668 = vadd.f32 %v667, %v648
      %v669 = vadd.f32 %v668, %v650
      %v670 = vadd.f32 %v669, %v652
      %v671 = vadd.f32 %v670, %v654
      %v672 = vadd.f32 %v671, %v656
      %v673 = vadd.f32 %v657, %v665
      %v674 = vadd.f32 %v658, %v672
      %675 = vst [vmem:[#allocation2] sm:$0xff] %v673
      %676 = vst [vmem:[#allocation2 + $0x8] sm:$0xff] %v674
      %p677 = scmp.eq.s32.totalorder %s23, 1
      // Predicated region
      $region45: #{rot_model_forward.2} parent=39 // pred_check
        %p678 = pneg %p677
      $region46: #{rot_model_forward.2} parent=39 // pred_check_branch
        %680 = sbr.rel (%p678) target = $region48
      $region47: #{rot_model_forward.2} parent=39 // pred_region
        %v681 = vld [vmem:[#allocation2] sm:$0xff]
        %v682 = vld [vmem:[#allocation2 + $0x8] sm:$0xff]
        %v683 = vrot.slane %v681, 4
        %v684 = vadd.f32 %v681, %v683
        %v685 = vrot.slane %v684, 2
        %v686 = vadd.f32 %v684, %v685
        %v687 = vrot.slane %v686, 1
        %v688 = vadd.f32 %v686, %v687
        %v689 = vrot.slane %v682, 4
        %v690 = vadd.f32 %v682, %v689
        %v691 = vrot.slane %v690, 2
        %v692 = vadd.f32 %v690, %v691
        %v693 = vrot.slane %v692, 1
        %v694 = vadd.f32 %v692, %v693
        %v697 = vcombine.low %v688, %v694
        %v699 = vunpack.c.l.s4 1966171168
        %v700 = vunpack.c.0.s8 %v699
        %v701 = vlaneseq
        %v702 = vshrl.u32 %v701, 7
        %v703 = vsub.s32 %v700, %v702
        %v704 = vrot.slane %v697, %v703
        %v706 = vunpack.c.l.s4 1966171168
        %v707 = vunpack.c.0.s8 %v706
        %v708 = vlaneseq
        %v709 = vshrl.u32 %v708, 7
        %v710 = vsub.s32 %v707, %v709
        %v711 = vrot.slane %v704, %v710
        %v713 = vlaneseq
        %vm714 = vcmp.ge.s32.totalorder %v713, 0
        %vm715 = vcmp.lt.s32.totalorder %v713, 256
        %vm716 = vmand %vm714, %vm715
        %717 = vst.msk [vmem:[%s281] sm:$0x3] %vm716, %v711
      $region48: #{rot_model_forward.2} parent=39 // pred_fallthru
        _
      %s718 = smul.u32 2, %s22
      %p719 = scmp.lt.s32.totalorder %s21, 1
      %s720 = scalar_select %p719, %s21, 1
      %p721 = scmp.lt.s32.totalorder %s718, 3
      %s722 = scalar_select %p721, %s718, 3
      %s723 = smul.addr %s720, 4
      %s724 = sadd.s32 %s722, %s723
      %s725 = scalar_lea.vmem %s5, %s724
      // Predicated region
      $region49: #{rot_model_forward.2} parent=39 // pred_check
        %p726 = pneg %p171
      $region50: #{rot_model_forward.2} parent=39 // pred_check_branch
        %728 = sbr.rel (%p726) target = $region52
      $region51: #{rot_model_forward.2} parent=39 // pred_region
        %s729 = smul.u32 2, %s22
      $region52: #{rot_model_forward.2} parent=39 // pred_fallthru
        _
    $region40: #{rot_model_forward.2} parent=5 // pred_fallthru
      _
    %p730 = scmp.le.s32.totalorder 2, %s11
    // Predicated region
    $region53: #{rot_model_forward.2} parent=5 // pred_check
      %p731 = pneg %p730
    $region54: #{rot_model_forward.2} parent=5 // pred_check_branch
      %733 = sbr.rel (%p731) target = $region56
    $region55: #{rot_model_forward.2} parent=5 // pred_region
      %s734 = ssub.s32 %s11, 2
      // Predicated region
      $region57: #{rot_model_forward.2} parent=55 // pred_check
        %p735 = pneg %p177
      $region58: #{rot_model_forward.2} parent=55 // pred_check_branch
        %737 = sbr.rel (%p735) target = $region60
      $region59: #{rot_model_forward.2} parent=55 // pred_region
        %s738 = smul.u32 2, %s25
        %p739 = scmp.lt.s32.totalorder %s24, 1
        %s740 = scalar_select %p739, %s24, 1
        %p741 = scmp.lt.s32.totalorder %s738, 3
        %s742 = scalar_select %p741, %s738, 3
        %s743 = smul.addr %s740, 4
        %s744 = sadd.s32 %s742, %s743
        %s745 = scalar_lea.vmem %s5, %s744
      $region60: #{rot_model_forward.2} parent=55 // pred_fallthru
        _
    $region56: #{rot_model_forward.2} parent=5 // pred_fallthru
      _
  $region6: #{rot_model_forward.2} parent=0 // loop_footer
    %s15 = sadd.s32 1, %s11
  $region7: #{rot_model_forward.2} parent=0 // loop_footer_branch
    %10 = sbr.rel target = $region3
  $region8: #{rot_model_forward.2} parent=0 // loop_exit
    _

// kernel: rot_model_forward.3
$region0: #{rot_model_forward.3}
  #allocation0 [shape = 'u32[]', space=smem, size = 0x4, offset = 0x4, fixed_abs, tag = 'smem constant byte address 0x4 - core index']
  #allocation1 [shape = 'u32[144,128]{1,0:T(1,128)}', space=vmem, size = 0x12000, scoped, tag = 'internal scratch']
  #allocation2 [shape = 'f32[1,1]{1,0:T(1,128)S(6)}', space=smem, size = 0x200, scoped, tag = 'scoped memory for rot_model_forward.3']
  %s0 = inlined_call_operand.vmem [shape: f32[2,1,512], index: 0, kind: input, shape index: {}]
  %s1 = inlined_call_operand.vmem [shape: f32[1,256], index: 1, kind: input, shape index: {}]
  %s2 = inlined_call_operand.vmem [shape: bf16[256,256], index: 2, kind: input, shape index: {}]
  %s3 = inlined_call_operand.vmem [shape: f32[1,256], index: 3, kind: input, shape index: {}]
  %s4 = inlined_call_operand.vmem [shape: f32[1,256], index: 4, kind: input, shape index: {}]
  %s5 = inlined_call_operand.<no memory space> [shape: f32[1,1], index: 5, kind: input, shape index: {}]
  %s6 = inlined_call_operand.vmem [shape: f32[2,1], index: 6, kind: output, shape index: {}]
  %s7 = sld [smem:[#allocation0]]
  $region34: #{rot_model_forward.3} parent=0
    _
  %s9 = ssub.s32 1, %s7
  %s10 = scalar_select 0, %s9, %s7
  %11 = sst [smem:[#allocation2]] %s5
  // Predicated region
  $region2: #{rot_model_forward.3} parent=0 // pred_check
    _
  $region3: #{rot_model_forward.3} parent=0 // pred_check_branch
    %13 = sbr.rel (0) target = $region5
  $region4: #{rot_model_forward.3} parent=0 // pred_region
    _
  $region5: #{rot_model_forward.3} parent=0 // pred_fallthru
    _
  // Predicated region
  $region6: #{rot_model_forward.3} parent=0 // pred_check
    _
  $region7: #{rot_model_forward.3} parent=0 // pred_check_branch
    %15 = sbr.rel (0) target = $region9
  $region8: #{rot_model_forward.3} parent=0 // pred_region
    _
  $region9: #{rot_model_forward.3} parent=0 // pred_fallthru
    _
  // Predicated region
  $region10: #{rot_model_forward.3} parent=0 // pred_check
    _
  $region11: #{rot_model_forward.3} parent=0 // pred_check_branch
    %17 = sbr.rel (0) target = $region13
  $region12: #{rot_model_forward.3} parent=0 // pred_region
    _
  $region13: #{rot_model_forward.3} parent=0 // pred_fallthru
    _
  // Predicated region
  $region14: #{rot_model_forward.3} parent=0 // pred_check
    _
  $region15: #{rot_model_forward.3} parent=0 // pred_check_branch
    %19 = sbr.rel (0) target = $region17
  $region16: #{rot_model_forward.3} parent=0 // pred_region
    _
  $region17: #{rot_model_forward.3} parent=0 // pred_fallthru
    _
  // Predicated region
  $region18: #{rot_model_forward.3} parent=0 // pred_check
    _
  $region19: #{rot_model_forward.3} parent=0 // pred_check_branch
    %21 = sbr.rel (0) target = $region21
  $region20: #{rot_model_forward.3} parent=0 // pred_region
    _
  $region21: #{rot_model_forward.3} parent=0 // pred_fallthru
    _
  // Predicated region
  $region22: #{rot_model_forward.3} parent=0 // pred_check
    _
  $region23: #{rot_model_forward.3} parent=0 // pred_check_branch
    %23 = sbr.rel (0) target = $region25
  $region24: #{rot_model_forward.3} parent=0 // pred_region
    _
  $region25: #{rot_model_forward.3} parent=0 // pred_fallthru
    _
  %v24 = vld [vmem:[%s0] sm:$0xf]
  %v25 = vld [vmem:[%s0 + $0x4] sm:$0xf]
  %v28 = vrot.slane %v24, 2
  %v29 = vrot.slane %v25, 2
  %v32 = vadd.f32 %v24, %v28
  %v33 = vadd.f32 %v25, %v29
  %v34 = vld [vmem:[%s1] sm:$0x3]
  %v36 = vlaneseq
  %v37 = vshrl.u32 %v36, 7
  %v38 = vsub.s32 0, %v37
  %v39 = vrot.slane %v34, %v38
  %v40 = vlaneseq
  %v41 = vshrl.u32 %v40, 7
  %v42 = vsub.s32 1, %v41
  %v43 = vrot.slane %v34, %v42
  %v44 = vcombine.low %v39, %v43
  %v46 = vunpack.c.l.s4 1966171168
  %v47 = vunpack.c.0.s8 %v46
  %v48 = vlaneseq
  %v49 = vshrl.u32 %v48, 7
  %v50 = vsub.s32 %v47, %v49
  %v51 = vrot.slane %v44, %v50
  %v52 = vcombine.high %v51, %v51
  %v54 = vunpack.c.l.s4 1966171168
  %v55 = vunpack.c.0.s8 %v54
  %v56 = vlaneseq
  %v57 = vshrl.u32 %v56, 7
  %v58 = vsub.s32 %v55, %v57
  %v59 = vrot.slane %v51, %v58
  %v61 = vunpack.c.l.s4 1966171168
  %v62 = vunpack.c.0.s8 %v61
  %v63 = vlaneseq
  %v64 = vshrl.u32 %v63, 7
  %v65 = vsub.s32 %v62, %v64
  %v66 = vrot.slane %v52, %v65
  %v69 = vsub.f32 %v32, %v59
  %v70 = vsub.f32 %v33, %v66
  %v71 = vmul.f32 %v69, 0.00390625
  %v72 = vmul.f32 %v70, 0.00390625
  %v75 = vlaneseq
  %v76 = vshrl.u32 %v75, 7
  %v77 = vsub.s32 0, %v76
  %v78 = vrot.slane %v71, %v77
  %v79 = vlaneseq
  %v80 = vshrl.u32 %v79, 7
  %v81 = vsub.s32 1, %v80
  %v82 = vrot.slane %v71, %v81
  %v83 = vlaneseq
  %v84 = vshrl.u32 %v83, 7
  %v85 = vsub.s32 0, %v84
  %v86 = vrot.slane %v72, %v85
  %v87 = vlaneseq
  %v88 = vshrl.u32 %v87, 7
  %v89 = vsub.s32 1, %v88
  %v90 = vrot.slane %v72, %v89
  %v95 = vpack.c.bf16 %v78, %v78
  %v96 = vpack.c.bf16 %v82, %v82
  %v97 = vpack.c.bf16 %v86, %v86
  %v98 = vpack.c.bf16 %v90, %v90
  %v99 = vld [vmem:[%s2] sm:$0xff]
  %v100 = vld [vmem:[%s2 + $0x8] sm:$0xff]
  %v101 = vld [vmem:[%s2 + $0x10] sm:$0xff]
  %v102 = vld [vmem:[%s2 + $0x18] sm:$0xff]
  %v103 = vld [vmem:[%s2 + $0x20] sm:$0xff]
  %v104 = vld [vmem:[%s2 + $0x28] sm:$0xff]
  %v105 = vld [vmem:[%s2 + $0x30] sm:$0xff]
  %v106 = vld [vmem:[%s2 + $0x38] sm:$0xff]
  %v107 = vld [vmem:[%s2 + $0x40] sm:$0xff]
  %v108 = vld [vmem:[%s2 + $0x48] sm:$0xff]
  %v109 = vld [vmem:[%s2 + $0x50] sm:$0xff]
  %v110 = vld [vmem:[%s2 + $0x58] sm:$0xff]
  %v111 = vld [vmem:[%s2 + $0x60] sm:$0xff]
  %v112 = vld [vmem:[%s2 + $0x68] sm:$0xff]
  %v113 = vld [vmem:[%s2 + $0x70] sm:$0xff]
  %v114 = vld [vmem:[%s2 + $0x78] sm:$0xff]
  %v115 = vld [vmem:[%s2 + $0x80] sm:$0xff]
  %v116 = vld [vmem:[%s2 + $0x88] sm:$0xff]
  %v117 = vld [vmem:[%s2 + $0x90] sm:$0xff]
  %v118 = vld [vmem:[%s2 + $0x98] sm:$0xff]
  %v119 = vld [vmem:[%s2 + $0xa0] sm:$0xff]
  %v120 = vld [vmem:[%s2 + $0xa8] sm:$0xff]
  %v121 = vld [vmem:[%s2 + $0xb0] sm:$0xff]
  %v122 = vld [vmem:[%s2 + $0xb8] sm:$0xff]
  %v123 = vld [vmem:[%s2 + $0xc0] sm:$0xff]
  %v124 = vld [vmem:[%s2 + $0xc8] sm:$0xff]
  %v125 = vld [vmem:[%s2 + $0xd0] sm:$0xff]
  %v126 = vld [vmem:[%s2 + $0xd8] sm:$0xff]
  %v127 = vld [vmem:[%s2 + $0xe0] sm:$0xff]
  %v128 = vld [vmem:[%s2 + $0xe8] sm:$0xff]
  %v129 = vld [vmem:[%s2 + $0xf0] sm:$0xff]
  %v130 = vld [vmem:[%s2 + $0xf8] sm:$0xff]
  %v131 = vld [vmem:[%s3] sm:$0x3]
  %v133 = vlaneseq
  %v134 = vshrl.u32 %v133, 7
  %v135 = vsub.s32 0, %v134
  %v136 = vrot.slane %v131, %v135
  %v137 = vlaneseq
  %v138 = vshrl.u32 %v137, 7
  %v139 = vsub.s32 1, %v138
  %v140 = vrot.slane %v131, %v139
  %v147 = vunpack.c.l.b16 %v95
  %v148 = vunpack.c.l.b16 %v96
  %v149 = vunpack.c.l.b16 %v97
  %v150 = vunpack.c.l.b16 %v98
  %v151 = vrot.slane %v149, 7
  %vm152 = vcmask 1041409
  %v153 = vsel %vm152, %v151, %v147
  %v154 = vrot.slane %v150, 7
  %v155 = vsel %vm152, %v154, %v148
  %v156 = vpack.c.b16 %v153, %v153
  %v157 = vpack.c.b16 %v155, %v155
  %v192 = vunpack.c.l.b16 %v99
  %v193 = vunpack.c.h.b16 %v99
  %v194 = vunpack.c.l.b16 %v100
  %v195 = vunpack.c.h.b16 %v100
  %v196 = vunpack.c.l.b16 %v101
  %v197 = vunpack.c.h.b16 %v101
  %v198 = vunpack.c.l.b16 %v102
  %v199 = vunpack.c.h.b16 %v102
  %v200 = vunpack.c.l.b16 %v103
  %v201 = vunpack.c.h.b16 %v103
  %v202 = vunpack.c.l.b16 %v104
  %v203 = vunpack.c.h.b16 %v104
  %v204 = vunpack.c.l.b16 %v105
  %v205 = vunpack.c.h.b16 %v105
  %v206 = vunpack.c.l.b16 %v106
  %v207 = vunpack.c.h.b16 %v106
  %v208 = vunpack.c.l.b16 %v107
  %v209 = vunpack.c.h.b16 %v107
  %v210 = vunpack.c.l.b16 %v108
  %v211 = vunpack.c.h.b16 %v108
  %v212 = vunpack.c.l.b16 %v109
  %v213 = vunpack.c.h.b16 %v109
  %v214 = vunpack.c.l.b16 %v110
  %v215 = vunpack.c.h.b16 %v110
  %v216 = vunpack.c.l.b16 %v111
  %v217 = vunpack.c.h.b16 %v111
  %v218 = vunpack.c.l.b16 %v112
  %v219 = vunpack.c.h.b16 %v112
  %v220 = vunpack.c.l.b16 %v113
  %v221 = vunpack.c.h.b16 %v113
  %v222 = vunpack.c.l.b16 %v114
  %v223 = vunpack.c.h.b16 %v114
  %v224 = vunpack.c.l.b16 %v115
  %v225 = vunpack.c.h.b16 %v115
  %v226 = vunpack.c.l.b16 %v116
  %v227 = vunpack.c.h.b16 %v116
  %v228 = vunpack.c.l.b16 %v117
  %v229 = vunpack.c.h.b16 %v117
  %v230 = vunpack.c.l.b16 %v118
  %v231 = vunpack.c.h.b16 %v118
  %v232 = vunpack.c.l.b16 %v119
  %v233 = vunpack.c.h.b16 %v119
  %v234 = vunpack.c.l.b16 %v120
  %v235 = vunpack.c.h.b16 %v120
  %v236 = vunpack.c.l.b16 %v121
  %v237 = vunpack.c.h.b16 %v121
  %v238 = vunpack.c.l.b16 %v122
  %v239 = vunpack.c.h.b16 %v122
  %v240 = vunpack.c.l.b16 %v123
  %v241 = vunpack.c.h.b16 %v123
  %v242 = vunpack.c.l.b16 %v124
  %v243 = vunpack.c.h.b16 %v124
  %v244 = vunpack.c.l.b16 %v125
  %v245 = vunpack.c.h.b16 %v125
  %v246 = vunpack.c.l.b16 %v126
  %v247 = vunpack.c.h.b16 %v126
  %v248 = vunpack.c.l.b16 %v127
  %v249 = vunpack.c.h.b16 %v127
  %v250 = vunpack.c.l.b16 %v128
  %v251 = vunpack.c.h.b16 %v128
  %v252 = vunpack.c.l.b16 %v129
  %v253 = vunpack.c.h.b16 %v129
  %v254 = vunpack.c.l.b16 %v130
  %v255 = vunpack.c.h.b16 %v130
  %v256 = vpack.c.b16 %v194, %v192
  %v257 = vpack.c.b16 %v195, %v193
  %v258 = vpack.c.b16 %v198, %v196
  %v259 = vpack.c.b16 %v199, %v197
  %v260 = vpack.c.b16 %v202, %v200
  %v261 = vpack.c.b16 %v203, %v201
  %v262 = vpack.c.b16 %v206, %v204
  %v263 = vpack.c.b16 %v207, %v205
  %v264 = vpack.c.b16 %v210, %v208
  %v265 = vpack.c.b16 %v211, %v209
  %v266 = vpack.c.b16 %v214, %v212
  %v267 = vpack.c.b16 %v215, %v213
  %v268 = vpack.c.b16 %v218, %v216
  %v269 = vpack.c.b16 %v219, %v217
  %v270 = vpack.c.b16 %v222, %v220
  %v271 = vpack.c.b16 %v223, %v221
  %v272 = vpack.c.b16 %v226, %v224
  %v273 = vpack.c.b16 %v227, %v225
  %v274 = vpack.c.b16 %v230, %v228
  %v275 = vpack.c.b16 %v231, %v229
  %v276 = vpack.c.b16 %v234, %v232
  %v277 = vpack.c.b16 %v235, %v233
  %v278 = vpack.c.b16 %v238, %v236
  %v279 = vpack.c.b16 %v239, %v237
  %v280 = vpack.c.b16 %v242, %v240
  %v281 = vpack.c.b16 %v243, %v241
  %v282 = vpack.c.b16 %v246, %v244
  %v283 = vpack.c.b16 %v247, %v245
  %v284 = vpack.c.b16 %v250, %v248
  %v285 = vpack.c.b16 %v251, %v249
  %v286 = vpack.c.b16 %v254, %v252
  %v287 = vpack.c.b16 %v255, %v253
  %320 = vmatprep.subr.bf16.mxu0 %v257
  %321 = vmatpush1.bf16.msra.mxu0 %v256
  %322 = vmatprep.subr.bf16.mxu0 %v259
  %323 = vmatpush1.bf16.msra.mxu0 %v258
  %324 = vmatprep.subr.bf16.mxu0 %v261
  %325 = vmatpush1.bf16.msra.mxu0 %v260
  %326 = vmatprep.subr.bf16.mxu0 %v263
  %327 = vmatpush1.bf16.msra.mxu0 %v262
  %328 = vmatprep.subr.bf16.mxu0 %v265
  %329 = vmatpush1.bf16.msra.mxu0 %v264
  %330 = vmatprep.subr.bf16.mxu0 %v267
  %331 = vmatpush1.bf16.msra.mxu0 %v266
  %332 = vmatprep.subr.bf16.mxu0 %v269
  %333 = vmatpush1.bf16.msra.mxu0 %v268
  %334 = vmatprep.subr.bf16.mxu0 %v271
  %335 = vmatpush1.bf16.msra.mxu0 %v270
  %336 = vmatprep.subr.bf16.mxu0 %v273
  %337 = vmatpush1.bf16.msra.mxu0 %v272
  %338 = vmatprep.subr.bf16.mxu0 %v275
  %339 = vmatpush1.bf16.msra.mxu0 %v274
  %340 = vmatprep.subr.bf16.mxu0 %v277
  %341 = vmatpush1.bf16.msra.mxu0 %v276
  %342 = vmatprep.subr.bf16.mxu0 %v279
  %343 = vmatpush1.bf16.msra.mxu0 %v278
  %344 = vmatprep.subr.bf16.mxu0 %v281
  %345 = vmatpush1.bf16.msra.mxu0 %v280
  %346 = vmatprep.subr.bf16.mxu0 %v283
  %347 = vmatpush1.bf16.msra.mxu0 %v282
  %348 = vmatprep.subr.bf16.mxu0 %v285
  %349 = vmatpush1.bf16.msra.mxu0 %v284
  %350 = vmatprep.subr.bf16.mxu0 %v287
  %351 = vmatpush1.bf16.msra.mxu0 %v286
  %352 = vmatprep.mubr.bf16.mxu0 %v157
  %353 = vmatmul.mubr.bf16.gmra.mrb[0].mxu0 %v156
  %v354 = vpop.f32.mrb[0].mxu0
  %v355 = vadd.f32 %v136, %v354
  %v356 = vpop.f32.mrb[0].mxu0
  %v357 = vadd.f32 %v140, %v356
  %v358 = vpop.f32.mrb[0].mxu0
  %v359 = vpop.f32.mrb[0].mxu0
  %360 = vdwg.mxu0
  %vm361 = vcmp.ge.f32.partialorder %v355, 0.0
  %vm362 = vcmp.ge.f32.partialorder %v357, 0.0
  %v363 = vmul.f32 %v355, 0.01
  %v364 = vmul.f32 %v357, 0.01
  %v365 = vsel %vm361, %v355, %v363
  %v366 = vsel %vm362, %v357, %v364
  %v367 = vld [vmem:[%s4] sm:$0x3]
  %v369 = vlaneseq
  %v370 = vshrl.u32 %v369, 7
  %v371 = vsub.s32 0, %v370
  %v372 = vrot.slane %v367, %v371
  %v373 = vlaneseq
  %v374 = vshrl.u32 %v373, 7
  %v375 = vsub.s32 1, %v374
  %v376 = vrot.slane %v367, %v375
  %v379 = vmul.f32 %v365, %v372
  %v380 = vmul.f32 %v366, %v376
  %vm381 = vcmask 1041408
  %v382 = vsel %vm381, %v379, 0.0
  %v383 = vsel %vm381, %v380, 0.0
  %v384 = vadd.f32 %v382, %v383
  %385 = vadd.xlane.f32.xlu0 %v384
  %v386 = vpop.xlane.xlu0 %385
  %s387 = sld [smem:[#allocation2]]
  %v388 = vstv %s387
  %v389 = vadd.f32 %v386, %v388
  %vm390 = vcmask 1024
  %391 = vst.msk [vmem:[%s6] sm:$0x3] %vm390, %v389
  // Predicated region
  $region26: #{rot_model_forward.3} parent=0 // pred_check
    _
  $region27: #{rot_model_forward.3} parent=0 // pred_check_branch
    %393 = sbr.rel (0) target = $region29
  $region28: #{rot_model_forward.3} parent=0 // pred_region
    _
  $region29: #{rot_model_forward.3} parent=0 // pred_fallthru
    _
  // Predicated region
  $region30: #{rot_model_forward.3} parent=0 // pred_check
    _
  $region31: #{rot_model_forward.3} parent=0 // pred_check_branch
    %395 = sbr.rel (0) target = $region33
  $region32: #{rot_model_forward.3} parent=0 // pred_region
    _
  $region33: #{rot_model_forward.3} parent=0 // pred_fallthru
    _

</llo_original>
